<compile_context>
chip_gen: v5e
topology: v5e:2x2
jax: 0.10.0
libtpu: 0.0.40
codegen_flags: <defaults>
</compile_context>

<pallas_src>
import functools

import jax
import jax.numpy as jnp
from jax.experimental import pallas as pl
from jax.experimental.pallas import tpu as pltpu


# ---------------------------------------------------------------------------
# Kernels
# ---------------------------------------------------------------------------
def _textmf_core(midx_ref, pidx_ref, p_tab_ref, q_tab_ref,
                 wproj_ref, bproj_ref, wcls_ref, bcls_ref,
                 out_ref, p_scr, q_scr, *, noise_ref=None, alpha_ref=None):
    """Shared body. noise_ref/alpha_ref are None for the test_mode variant."""
    B = out_ref.shape[0]

    # --- in-kernel embedding gathers: table rows -> VMEM scratch -------------
    # (B is small and static, so the Python loop fully unrolls.)
    for i in range(B):
        m = midx_ref[i]
        r = pidx_ref[i]
        p_scr[pl.ds(i, 1), :] = p_tab_ref[pl.ds(m, 1), :]
        q_scr[pl.ds(i, 1), :] = q_tab_ref[pl.ds(r, 1), :]

    q = q_scr[...]                                              # (B, T) f32
    if noise_ref is not None:
        # training: q += noise * alpha   (f32 on the VPU)
        q = q + noise_ref[...] * alpha_ref[0]

    # q = text_proj(q)  -> (B, D_pad); bf16 operands, f32 accumulation on MXU
    qp = jnp.dot(q.astype(jnp.bfloat16), wproj_ref[...],
                 preferred_element_type=jnp.float32) + bproj_ref[...]

    # h = p * q   (elementwise, f32)
    h = p_scr[...] * qp                                         # (B, D_pad)

    # logits = classifier(h) -> (B, C_pad)
    logits = jnp.dot(h.astype(jnp.bfloat16), wcls_ref[...],
                     preferred_element_type=jnp.float32) + bcls_ref[...]
    out_ref[...] = logits.astype(out_ref.dtype)


def _textmf_train_kernel(midx_ref, pidx_ref, alpha_ref,
                         p_tab_ref, q_tab_ref, noise_ref,
                         wproj_ref, bproj_ref, wcls_ref, bcls_ref,
                         out_ref, p_scr, q_scr):
    _textmf_core(midx_ref, pidx_ref, p_tab_ref, q_tab_ref,
                 wproj_ref, bproj_ref, wcls_ref, bcls_ref,
                 out_ref, p_scr, q_scr,
                 noise_ref=noise_ref, alpha_ref=alpha_ref)


def _textmf_test_kernel(midx_ref, pidx_ref,
                        p_tab_ref, q_tab_ref,
                        wproj_ref, bproj_ref, wcls_ref, bcls_ref,
                        out_ref, p_scr, q_scr):
    _textmf_core(midx_ref, pidx_ref, p_tab_ref, q_tab_ref,
                 wproj_ref, bproj_ref, wcls_ref, bcls_ref,
                 out_ref, p_scr, q_scr)


# ---------------------------------------------------------------------------
# Wrapper
# ---------------------------------------------------------------------------
_LANE = 128


def _pad_last(x, target):
    return jnp.pad(x, ((0, 0), (0, target - x.shape[1])))


def textmf_forward(params, model_idx, prompt_idx, *, alpha,
                   test_mode=False, noise_key=None):
    """Pallas implementation of TextMF.forward."""
    P, Q = params["P"], params["Q"]
    W_proj, b_proj = params["W_proj"], params["b_proj"]
    W_cls, b_cls = params["W_cls"], params["b_cls"]

    D = P.shape[1]
    T = Q.shape[1]
    C = W_cls.shape[1]
    B = model_idx.shape[0]

    D_pad = max(_LANE, ((D + _LANE - 1) // _LANE) * _LANE)
    C_pad = max(_LANE, ((C + _LANE - 1) // _LANE) * _LANE)

    # Lane-dense, zero-padded operands (zeros keep the math exact).
    P_p = _pad_last(P, D_pad)                                        # (M, D_pad)
    Wp = _pad_last(W_proj, D_pad).astype(jnp.bfloat16)               # (T, D_pad)
    bp = _pad_last(b_proj, D_pad)                                    # (1, D_pad)
    Wc = jnp.pad(W_cls, ((0, D_pad - D), (0, C_pad - C))).astype(jnp.bfloat16)
    bc = _pad_last(b_cls, C_pad)                                     # (1, C_pad)

    midx = model_idx.astype(jnp.int32)
    pidx = prompt_idx.astype(jnp.int32)

    smem = pl.BlockSpec(memory_space=pltpu.MemorySpace.SMEM)
    vmem = pl.BlockSpec(memory_space=pltpu.MemorySpace.VMEM)

    scratch_shapes = [
        pltpu.VMEM((B, D_pad), jnp.float32),   # gathered p rows
        pltpu.VMEM((B, T), jnp.float32),       # gathered q rows
    ]

    if test_mode:
        kernel = _textmf_test_kernel
        inputs = (midx, pidx, P_p, Q, Wp, bp, Wc, bc)
        in_specs = [smem, smem, vmem, vmem, vmem, vmem, vmem, vmem]
    else:
        if noise_key is None:
            raise ValueError("noise_key is required when test_mode=False")
        # TODO(synk): generate the noise in-kernel with pltpu.prng_seed +
        # pltpu.prng_random_bits to drop this (small) extra input stream.
        noise = jax.random.normal(noise_key, (B, T), dtype=Q.dtype)
        alpha_arr = jnp.full((1,), alpha, dtype=jnp.float32)
        kernel = _textmf_train_kernel
        inputs = (midx, pidx, alpha_arr, P_p, Q, noise, Wp, bp, Wc, bc)
        in_specs = [smem, smem, smem, vmem, vmem, vmem, vmem, vmem, vmem, vmem]

    flops = 2 * B * (T * D_pad + D_pad * C_pad)
    bytes_accessed = (sum(int(x.size) * x.dtype.itemsize for x in inputs)
                      + B * C_pad * 4)

    out = pl.pallas_call(
        kernel,
        out_shape=jax.ShapeDtypeStruct((B, C_pad), jnp.float32),
        in_specs=in_specs,
        out_specs=vmem,
        scratch_shapes=scratch_shapes,
        cost_estimate=pl.CostEstimate(flops=flops, transcendentals=0,
                                      bytes_accessed=bytes_accessed),
    )(*inputs)

    return out[:, :C]


def textmf_predict(params, model_idx, prompt_idx, *, alpha):
    logits = textmf_forward(params, model_idx, prompt_idx,
                            alpha=alpha, test_mode=True)
    return jnp.argmax(logits, axis=1)


# ---------------------------------------------------------------------------
# Parameter init (logical / unpadded shapes, matching the PyTorch module;
# Linear weights stored pre-transposed as (in_features, out_features)).
# ---------------------------------------------------------------------------
def init_params(key, num_models, num_prompts, model_embedding_dim,
                text_dim, num_classes):
    ks = jax.random.split(key, 6)
    P = jax.random.normal(ks[0], (num_models, model_embedding_dim), jnp.float32)
    Q = jax.random.normal(ks[1], (num_prompts, text_dim), jnp.float32)
    W_proj = jax.random.normal(ks[2], (text_dim, model_embedding_dim),
                               jnp.float32) * (1.0 / jnp.sqrt(text_dim))
    b_proj = jax.random.normal(ks[3], (1, model_embedding_dim), jnp.float32) * 0.01
    W_cls = jax.random.normal(ks[4], (model_embedding_dim, num_classes),
                              jnp.float32) * (1.0 / jnp.sqrt(model_embedding_dim))
    b_cls = jax.random.normal(ks[5], (1, num_classes), jnp.float32) * 0.01
    return dict(P=P, Q=Q, W_proj=W_proj, b_proj=b_proj,
                W_cls=W_cls, b_cls=b_cls)


# ---------------------------------------------------------------------------
if __name__ == "__main__":
    B = 8
    num_models = 16
    num_prompts = 32
    model_embedding_dim = 64
    text_dim = 256
    num_classes = 2
    alpha = 0.1

    root = jax.random.PRNGKey(0)
    k_params, k_model, k_prompt, k_noise = jax.random.split(root, 4)

    params = init_params(k_params, num_models, num_prompts,
                         model_embedding_dim, text_dim, num_classes)

    model_idx = jax.random.randint(k_model, (B,), 0, num_models, dtype=jnp.int32)
    prompt_idx = jax.random.randint(k_prompt, (B,), 0, num_prompts, dtype=jnp.int32)

    # training-mode forward (noise injected), test-mode forward, predict
    logits_train = textmf_forward(params, model_idx, prompt_idx,
                                  alpha=alpha, test_mode=False,
                                  noise_key=k_noise)
    logits_test = textmf_forward(params, model_idx, prompt_idx,
                                 alpha=alpha, test_mode=True)
    preds = textmf_predict(params, model_idx, prompt_idx, alpha=alpha)
    jax.block_until_ready((logits_train, logits_test, preds))

    assert logits_train.shape == (B, num_classes)
    assert logits_test.shape == (B, num_classes)
    assert preds.shape == (B,)

    # Pure-JAX references mirroring the kernel's bf16-operand / f32-accum math.
    Wp_b = params["W_proj"].astype(jnp.bfloat16)
    Wc_b = params["W_cls"].astype(jnp.bfloat16)
    p_r = jnp.take(params["P"], model_idx, axis=0)
    q_r = jnp.take(params["Q"], prompt_idx, axis=0)

    def ref_logits(q):
        qp = jnp.dot(q.astype(jnp.bfloat16), Wp_b,
                     preferred_element_type=jnp.float32) + params["b_proj"]
        h = p_r * qp
        return jnp.dot(h.astype(jnp.bfloat16), Wc_b,
                       preferred_element_type=jnp.float32) + params["b_cls"]

    ref_test = ref_logits(q_r)
    noise = jax.random.normal(k_noise, (B, text_dim), dtype=jnp.float32)
    ref_train = ref_logits(q_r + noise * alpha)

    assert jnp.allclose(logits_test, ref_test, atol=2e-2, rtol=2e-2)
    assert jnp.allclose(logits_train, ref_train, atol=2e-2, rtol=2e-2)
    assert jnp.array_equal(preds, jnp.argmax(ref_test, axis=1))

    print("KERNEL_OK")
</pallas_src>

<mosaic_0001>
module attributes {stable_mosaic.version = 11 : i64} {
  func.func @_textmf_train_kernel(%arg0: memref<8xi32, #tpu.memory_space<smem>>, %arg1: memref<8xi32, #tpu.memory_space<smem>>, %arg2: memref<1xf32, #tpu.memory_space<smem>>, %arg3: memref<16x128xf32, #tpu.memory_space<vmem>>, %arg4: memref<32x256xf32, #tpu.memory_space<vmem>>, %arg5: memref<8x256xf32, #tpu.memory_space<vmem>>, %arg6: memref<256x128xbf16, #tpu.memory_space<vmem>>, %arg7: memref<1x128xf32, #tpu.memory_space<vmem>>, %arg8: memref<128x128xbf16, #tpu.memory_space<vmem>>, %arg9: memref<1x128xf32, #tpu.memory_space<vmem>>, %arg10: memref<8x128xf32, #tpu.memory_space<vmem>>, %arg11: memref<8x128xf32, #tpu.memory_space<vmem>>, %arg12: memref<8x256xf32, #tpu.memory_space<vmem>>) attributes {dimension_semantics = [], scalar_prefetch = 0 : i64, scratch_operands = 2 : i64, tpu.core_type = #tpu.core_type<tc>} {
    %c0 = arith.constant 0 : index
    %0 = memref.load %arg0[%c0] : memref<8xi32, #tpu.memory_space<smem>>
    %c0_0 = arith.constant 0 : index
    %1 = memref.load %arg1[%c0_0] : memref<8xi32, #tpu.memory_space<smem>>
    %2 = arith.index_cast %0 : i32 to index
    %c0_1 = arith.constant 0 : index
    %3 = vector.load %arg3[%2, %c0_1] : memref<16x128xf32, #tpu.memory_space<vmem>>, vector<1x128xf32>
    %c0_2 = arith.constant 0 : index
    %c0_3 = arith.constant 0 : index
    %4 = vector.load %arg11[%c0_2, %c0_3] : memref<8x128xf32, #tpu.memory_space<vmem>>, vector<1x128xf32>
    tpu.vector_store %arg11[%c0_2, %c0_3], %3 {strides = array<i32>} : memref<8x128xf32, #tpu.memory_space<vmem>>, vector<1x128xf32>,
    %5 = arith.index_cast %1 : i32 to index
    %c0_4 = arith.constant 0 : index
    %6 = vector.load %arg4[%5, %c0_4] : memref<32x256xf32, #tpu.memory_space<vmem>>, vector<1x256xf32>
    %c0_5 = arith.constant 0 : index
    %c0_6 = arith.constant 0 : index
    %7 = vector.load %arg12[%c0_5, %c0_6] : memref<8x256xf32, #tpu.memory_space<vmem>>, vector<1x256xf32>
    tpu.vector_store %arg12[%c0_5, %c0_6], %6 {strides = array<i32>} : memref<8x256xf32, #tpu.memory_space<vmem>>, vector<1x256xf32>,
    %c1 = arith.constant 1 : index
    %8 = memref.load %arg0[%c1] : memref<8xi32, #tpu.memory_space<smem>>
    %c1_7 = arith.constant 1 : index
    %9 = memref.load %arg1[%c1_7] : memref<8xi32, #tpu.memory_space<smem>>
    %10 = arith.index_cast %8 : i32 to index
    %c0_8 = arith.constant 0 : index
    %11 = vector.load %arg3[%10, %c0_8] : memref<16x128xf32, #tpu.memory_space<vmem>>, vector<1x128xf32>
    %c1_9 = arith.constant 1 : index
    %c0_10 = arith.constant 0 : index
    %12 = vector.load %arg11[%c1_9, %c0_10] : memref<8x128xf32, #tpu.memory_space<vmem>>, vector<1x128xf32>
    tpu.vector_store %arg11[%c1_9, %c0_10], %11 {strides = array<i32>} : memref<8x128xf32, #tpu.memory_space<vmem>>, vector<1x128xf32>,
    %13 = arith.index_cast %9 : i32 to index
    %c0_11 = arith.constant 0 : index
    %14 = vector.load %arg4[%13, %c0_11] : memref<32x256xf32, #tpu.memory_space<vmem>>, vector<1x256xf32>
    %c1_12 = arith.constant 1 : index
    %c0_13 = arith.constant 0 : index
    %15 = vector.load %arg12[%c1_12, %c0_13] : memref<8x256xf32, #tpu.memory_space<vmem>>, vector<1x256xf32>
    tpu.vector_store %arg12[%c1_12, %c0_13], %14 {strides = array<i32>} : memref<8x256xf32, #tpu.memory_space<vmem>>, vector<1x256xf32>,
    %c2 = arith.constant 2 : index
    %16 = memref.load %arg0[%c2] : memref<8xi32, #tpu.memory_space<smem>>
    %c2_14 = arith.constant 2 : index
    %17 = memref.load %arg1[%c2_14] : memref<8xi32, #tpu.memory_space<smem>>
    %18 = arith.index_cast %16 : i32 to index
    %c0_15 = arith.constant 0 : index
    %19 = vector.load %arg3[%18, %c0_15] : memref<16x128xf32, #tpu.memory_space<vmem>>, vector<1x128xf32>
    %c2_16 = arith.constant 2 : index
    %c0_17 = arith.constant 0 : index
    %20 = vector.load %arg11[%c2_16, %c0_17] : memref<8x128xf32, #tpu.memory_space<vmem>>, vector<1x128xf32>
    tpu.vector_store %arg11[%c2_16, %c0_17], %19 {strides = array<i32>} : memref<8x128xf32, #tpu.memory_space<vmem>>, vector<1x128xf32>,
    %21 = arith.index_cast %17 : i32 to index
    %c0_18 = arith.constant 0 : index
    %22 = vector.load %arg4[%21, %c0_18] : memref<32x256xf32, #tpu.memory_space<vmem>>, vector<1x256xf32>
    %c2_19 = arith.constant 2 : index
    %c0_20 = arith.constant 0 : index
    %23 = vector.load %arg12[%c2_19, %c0_20] : memref<8x256xf32, #tpu.memory_space<vmem>>, vector<1x256xf32>
    tpu.vector_store %arg12[%c2_19, %c0_20], %22 {strides = array<i32>} : memref<8x256xf32, #tpu.memory_space<vmem>>, vector<1x256xf32>,
    %c3 = arith.constant 3 : index
    %24 = memref.load %arg0[%c3] : memref<8xi32, #tpu.memory_space<smem>>
    %c3_21 = arith.constant 3 : index
    %25 = memref.load %arg1[%c3_21] : memref<8xi32, #tpu.memory_space<smem>>
    %26 = arith.index_cast %24 : i32 to index
    %c0_22 = arith.constant 0 : index
    %27 = vector.load %arg3[%26, %c0_22] : memref<16x128xf32, #tpu.memory_space<vmem>>, vector<1x128xf32>
    %c3_23 = arith.constant 3 : index
    %c0_24 = arith.constant 0 : index
    %28 = vector.load %arg11[%c3_23, %c0_24] : memref<8x128xf32, #tpu.memory_space<vmem>>, vector<1x128xf32>
    tpu.vector_store %arg11[%c3_23, %c0_24], %27 {strides = array<i32>} : memref<8x128xf32, #tpu.memory_space<vmem>>, vector<1x128xf32>,
    %29 = arith.index_cast %25 : i32 to index
    %c0_25 = arith.constant 0 : index
    %30 = vector.load %arg4[%29, %c0_25] : memref<32x256xf32, #tpu.memory_space<vmem>>, vector<1x256xf32>
    %c3_26 = arith.constant 3 : index
    %c0_27 = arith.constant 0 : index
    %31 = vector.load %arg12[%c3_26, %c0_27] : memref<8x256xf32, #tpu.memory_space<vmem>>, vector<1x256xf32>
    tpu.vector_store %arg12[%c3_26, %c0_27], %30 {strides = array<i32>} : memref<8x256xf32, #tpu.memory_space<vmem>>, vector<1x256xf32>,
    %c4 = arith.constant 4 : index
    %32 = memref.load %arg0[%c4] : memref<8xi32, #tpu.memory_space<smem>>
    %c4_28 = arith.constant 4 : index
    %33 = memref.load %arg1[%c4_28] : memref<8xi32, #tpu.memory_space<smem>>
    %34 = arith.index_cast %32 : i32 to index
    %c0_29 = arith.constant 0 : index
    %35 = vector.load %arg3[%34, %c0_29] : memref<16x128xf32, #tpu.memory_space<vmem>>, vector<1x128xf32>
    %c4_30 = arith.constant 4 : index
    %c0_31 = arith.constant 0 : index
    %36 = vector.load %arg11[%c4_30, %c0_31] : memref<8x128xf32, #tpu.memory_space<vmem>>, vector<1x128xf32>
    tpu.vector_store %arg11[%c4_30, %c0_31], %35 {strides = array<i32>} : memref<8x128xf32, #tpu.memory_space<vmem>>, vector<1x128xf32>,
    %37 = arith.index_cast %33 : i32 to index
    %c0_32 = arith.constant 0 : index
    %38 = vector.load %arg4[%37, %c0_32] : memref<32x256xf32, #tpu.memory_space<vmem>>, vector<1x256xf32>
    %c4_33 = arith.constant 4 : index
    %c0_34 = arith.constant 0 : index
    %39 = vector.load %arg12[%c4_33, %c0_34] : memref<8x256xf32, #tpu.memory_space<vmem>>, vector<1x256xf32>
    tpu.vector_store %arg12[%c4_33, %c0_34], %38 {strides = array<i32>} : memref<8x256xf32, #tpu.memory_space<vmem>>, vector<1x256xf32>,
    %c5 = arith.constant 5 : index
    %40 = memref.load %arg0[%c5] : memref<8xi32, #tpu.memory_space<smem>>
    %c5_35 = arith.constant 5 : index
    %41 = memref.load %arg1[%c5_35] : memref<8xi32, #tpu.memory_space<smem>>
    %42 = arith.index_cast %40 : i32 to index
    %c0_36 = arith.constant 0 : index
    %43 = vector.load %arg3[%42, %c0_36] : memref<16x128xf32, #tpu.memory_space<vmem>>, vector<1x128xf32>
    %c5_37 = arith.constant 5 : index
    %c0_38 = arith.constant 0 : index
    %44 = vector.load %arg11[%c5_37, %c0_38] : memref<8x128xf32, #tpu.memory_space<vmem>>, vector<1x128xf32>
    tpu.vector_store %arg11[%c5_37, %c0_38], %43 {strides = array<i32>} : memref<8x128xf32, #tpu.memory_space<vmem>>, vector<1x128xf32>,
    %45 = arith.index_cast %41 : i32 to index
    %c0_39 = arith.constant 0 : index
    %46 = vector.load %arg4[%45, %c0_39] : memref<32x256xf32, #tpu.memory_space<vmem>>, vector<1x256xf32>
    %c5_40 = arith.constant 5 : index
    %c0_41 = arith.constant 0 : index
    %47 = vector.load %arg12[%c5_40, %c0_41] : memref<8x256xf32, #tpu.memory_space<vmem>>, vector<1x256xf32>
    tpu.vector_store %arg12[%c5_40, %c0_41], %46 {strides = array<i32>} : memref<8x256xf32, #tpu.memory_space<vmem>>, vector<1x256xf32>,
    %c6 = arith.constant 6 : index
    %48 = memref.load %arg0[%c6] : memref<8xi32, #tpu.memory_space<smem>>
    %c6_42 = arith.constant 6 : index
    %49 = memref.load %arg1[%c6_42] : memref<8xi32, #tpu.memory_space<smem>>
    %50 = arith.index_cast %48 : i32 to index
    %c0_43 = arith.constant 0 : index
    %51 = vector.load %arg3[%50, %c0_43] : memref<16x128xf32, #tpu.memory_space<vmem>>, vector<1x128xf32>
    %c6_44 = arith.constant 6 : index
    %c0_45 = arith.constant 0 : index
    %52 = vector.load %arg11[%c6_44, %c0_45] : memref<8x128xf32, #tpu.memory_space<vmem>>, vector<1x128xf32>
    tpu.vector_store %arg11[%c6_44, %c0_45], %51 {strides = array<i32>} : memref<8x128xf32, #tpu.memory_space<vmem>>, vector<1x128xf32>,
    %53 = arith.index_cast %49 : i32 to index
    %c0_46 = arith.constant 0 : index
    %54 = vector.load %arg4[%53, %c0_46] : memref<32x256xf32, #tpu.memory_space<vmem>>, vector<1x256xf32>
    %c6_47 = arith.constant 6 : index
    %c0_48 = arith.constant 0 : index
    %55 = vector.load %arg12[%c6_47, %c0_48] : memref<8x256xf32, #tpu.memory_space<vmem>>, vector<1x256xf32>
    tpu.vector_store %arg12[%c6_47, %c0_48], %54 {strides = array<i32>} : memref<8x256xf32, #tpu.memory_space<vmem>>, vector<1x256xf32>,
    %c7 = arith.constant 7 : index
    %56 = memref.load %arg0[%c7] : memref<8xi32, #tpu.memory_space<smem>>
    %c7_49 = arith.constant 7 : index
    %57 = memref.load %arg1[%c7_49] : memref<8xi32, #tpu.memory_space<smem>>
    %58 = arith.index_cast %56 : i32 to index
    %c0_50 = arith.constant 0 : index
    %59 = vector.load %arg3[%58, %c0_50] : memref<16x128xf32, #tpu.memory_space<vmem>>, vector<1x128xf32>
    %c7_51 = arith.constant 7 : index
    %c0_52 = arith.constant 0 : index
    %60 = vector.load %arg11[%c7_51, %c0_52] : memref<8x128xf32, #tpu.memory_space<vmem>>, vector<1x128xf32>
    tpu.vector_store %arg11[%c7_51, %c0_52], %59 {strides = array<i32>} : memref<8x128xf32, #tpu.memory_space<vmem>>, vector<1x128xf32>,
    %61 = arith.index_cast %57 : i32 to index
    %c0_53 = arith.constant 0 : index
    %62 = vector.load %arg4[%61, %c0_53] : memref<32x256xf32, #tpu.memory_space<vmem>>, vector<1x256xf32>
    %c7_54 = arith.constant 7 : index
    %c0_55 = arith.constant 0 : index
    %63 = vector.load %arg12[%c7_54, %c0_55] : memref<8x256xf32, #tpu.memory_space<vmem>>, vector<1x256xf32>
    tpu.vector_store %arg12[%c7_54, %c0_55], %62 {strides = array<i32>} : memref<8x256xf32, #tpu.memory_space<vmem>>, vector<1x256xf32>,
    %c0_56 = arith.constant 0 : index
    %c0_57 = arith.constant 0 : index
    %64 = vector.load %arg12[%c0_56, %c0_57] : memref<8x256xf32, #tpu.memory_space<vmem>>, vector<8x256xf32>
    %c0_58 = arith.constant 0 : index
    %c0_59 = arith.constant 0 : index
    %65 = vector.load %arg5[%c0_58, %c0_59] : memref<8x256xf32, #tpu.memory_space<vmem>>, vector<8x256xf32>
    %c0_60 = arith.constant 0 : index
    %66 = memref.load %arg2[%c0_60] : memref<1xf32, #tpu.memory_space<smem>>
    %67 = vector.broadcast %66 : f32 to vector<8x256xf32>
    %68 = arith.mulf %65, %67 : vector<8x256xf32>
    %69 = arith.addf %64, %68 : vector<8x256xf32>
    %70 = arith.truncf %69 : vector<8x256xf32> to vector<8x256xbf16>
    %c0_61 = arith.constant 0 : index
    %c0_62 = arith.constant 0 : index
    %71 = vector.load %arg6[%c0_61, %c0_62] : memref<256x128xbf16, #tpu.memory_space<vmem>>, vector<256x128xbf16>
    %cst = arith.constant dense<0.000000e+00> : vector<8x128xf32>
    %72 = tpu.matmul %70, %71, %cst {dimension_numbers = #tpu.dot_dimension_numbers<[1], [0], [0], [1], [0, 0, 1, 1], [], []>} : vector<8x256xbf16>, vector<256x128xbf16>, vector<8x128xf32> -> vector<8x128xf32>
    %c0_63 = arith.constant 0 : index
    %c0_64 = arith.constant 0 : index
    %73 = vector.load %arg7[%c0_63, %c0_64] : memref<1x128xf32, #tpu.memory_space<vmem>>, vector<1x128xf32>
    %74 = vector.broadcast %73 : vector<1x128xf32> to vector<8x128xf32>
    %75 = arith.addf %72, %74 : vector<8x128xf32>
    %c0_65 = arith.constant 0 : index
    %c0_66 = arith.constant 0 : index
    %76 = vector.load %arg11[%c0_65, %c0_66] : memref<8x128xf32, #tpu.memory_space<vmem>>, vector<8x128xf32>
    %77 = arith.mulf %76, %75 : vector<8x128xf32>
    %78 = arith.truncf %77 : vector<8x128xf32> to vector<8x128xbf16>
    %c0_67 = arith.constant 0 : index
    %c0_68 = arith.constant 0 : index
    %79 = vector.load %arg8[%c0_67, %c0_68] : memref<128x128xbf16, #tpu.memory_space<vmem>>, vector<128x128xbf16>
    %cst_69 = arith.constant dense<0.000000e+00> : vector<8x128xf32>
    %80 = tpu.matmul %78, %79, %cst_69 {dimension_numbers = #tpu.dot_dimension_numbers<[1], [0], [0], [1], [0, 0, 1, 1], [], []>} : vector<8x128xbf16>, vector<128x128xbf16>, vector<8x128xf32> -> vector<8x128xf32>
    %c0_70 = arith.constant 0 : index
    %c0_71 = arith.constant 0 : index
    %81 = vector.load %arg9[%c0_70, %c0_71] : memref<1x128xf32, #tpu.memory_space<vmem>>, vector<1x128xf32>
    %82 = vector.broadcast %81 : vector<1x128xf32> to vector<8x128xf32>
    %83 = arith.addf %80, %82 : vector<8x128xf32>
    %c0_72 = arith.constant 0 : index
    %c0_73 = arith.constant 0 : index
    %84 = vector.load %arg10[%c0_72, %c0_73] : memref<8x128xf32, #tpu.memory_space<vmem>>, vector<8x128xf32>
    tpu.vector_store %arg10[%c0_72, %c0_73], %83 {strides = array<i32>} : memref<8x128xf32, #tpu.memory_space<vmem>>, vector<8x128xf32>,
    return
  }
}

</mosaic_0001>

<llo_original>
// kernel: tpu_custom_call.1
$region0: #{tpu_custom_call.1}
  #allocation0 [shape = 'u32[]', space=smem, size = 0x4, offset = 0x4, fixed_abs, tag = 'smem constant byte address 0x4 - core index']
  #allocation1 [shape = 'u32[72,128]{1,0:T(1,128)}', space=vmem, size = 0x9000, scoped, tag = 'internal scratch']
  #allocation2 [shape = 'f32[8,128]{1,0:T(8,128)}', space=vmem, size = 0x1000, scoped, tag = 'scratch operand']
  #allocation3 [shape = 'f32[8,256]{1,0:T(8,128)}', space=vmem, size = 0x2000, scoped, tag = 'scratch operand']
  #allocation4 [shape = 'f32[1]{0:T(128)S(6)}', space=smem, size = 0x200, scoped, tag = 'scoped memory for tpu_custom_call.1']
  %s0 = inlined_call_operand.vmem [shape: s32[8], index: 0, kind: input, shape index: {}]
  %s1 = inlined_call_operand.vmem [shape: s32[8], index: 1, kind: input, shape index: {}]
  %s2 = inlined_call_operand.<no memory space> [shape: f32[1], index: 2, kind: input, shape index: {}]
  %s3 = inlined_call_operand.hbm [shape: f32[16,128], index: 3, kind: input, shape index: {}]
  %s4 = inlined_call_operand.hbm [shape: f32[32,256], index: 4, kind: input, shape index: {}]
  %s5 = inlined_call_operand.hbm [shape: f32[8,256], index: 5, kind: input, shape index: {}]
  %s6 = inlined_call_operand.hbm [shape: bf16[256,128], index: 6, kind: input, shape index: {}]
  %s7 = inlined_call_operand.vmem [shape: f32[1,128], index: 7, kind: input, shape index: {}]
  %s8 = inlined_call_operand.hbm [shape: bf16[128,128], index: 8, kind: input, shape index: {}]
  %s9 = inlined_call_operand.vmem [shape: f32[1,128], index: 9, kind: input, shape index: {}]
  %s10 = inlined_call_operand.hbm [shape: f32[8,128], index: 10, kind: output, shape index: {}]
  %s11 = sld [smem:[#allocation0]]
  $region78: #{tpu_custom_call.1} parent=0
    _
  %s13 = ssub.s32 1, %s11
  %s14 = scalar_select 0, %s13, %s11
  %15 = sst [smem:[#allocation4]] %s2
  $region1: #{tpu_custom_call.1} parent=0
    #allocation5 [shape = 'u8[512]{0}', space=smem, size = 0x200, scoped, tag = 'input window, operand 0, single buffered']
    #allocation6 [shape = 's32[1]{0}', space=sflag, size = 0x4, scoped, tag = 'scoped memory for tpu_custom_call.1']
    #allocation7 [shape = 's32[1]{0}', space=sflag, size = 0x4, scoped, tag = 'scoped memory for tpu_custom_call.1']
    #allocation8 [shape = 's32[1]{0}', space=sflag, size = 0x4, scoped, tag = 'scoped memory for tpu_custom_call.1']
    #allocation9 [shape = 'u8[512]{0}', space=smem, size = 0x200, scoped, tag = 'input window, operand 1, single buffered']
    #allocation10 [shape = 's32[1]{0}', space=sflag, size = 0x4, scoped, tag = 'scoped memory for tpu_custom_call.1']
    #allocation11 [shape = 'u8[8192]{0}', space=vmem, size = 0x2000, scoped, tag = 'input window, operand 3, single buffered']
    #allocation12 [shape = 'u8[32768]{0}', space=vmem, size = 0x8000, scoped, tag = 'input window, operand 4, single buffered']
    #allocation13 [shape = 's32[1]{0}', space=sflag, size = 0x4, scoped, tag = 'scoped memory for tpu_custom_call.1']
    #allocation14 [shape = 'u8[8192]{0}', space=vmem, size = 0x2000, scoped, tag = 'input window, operand 5, single buffered']
    #allocation15 [shape = 'u8[65536]{0}', space=vmem, size = 0x10000, scoped, tag = 'input window, operand 6, single buffered']
    #allocation16 [shape = 's32[1]{0}', space=sflag, size = 0x4, scoped, tag = 'scoped memory for tpu_custom_call.1']
    #allocation17 [shape = 'u8[32768]{0}', space=vmem, size = 0x8000, scoped, tag = 'input window, operand 8, single buffered']
    #allocation18 [shape = 'u8[4096]{0}', space=vmem, size = 0x1000, scoped, tag = 'output window, operand 0, single buffered']
    %16 = vsyncpa [#allocation8], 0
    %17 = vsyncpa [#allocation10], 0
    %18 = vsyncpa [#allocation6], 0
    %19 = vsyncpa [#allocation13], 0
    %20 = vsyncpa [#allocation16], 0
    %21 = vsyncpa [#allocation7], 0
    // Predicated region
    $region2: #{tpu_custom_call.1} parent=1 // pred_check
      _
    $region3: #{tpu_custom_call.1} parent=1 // pred_check_branch
      %23 = sbr.rel (0) target = $region5
    $region4: #{tpu_custom_call.1} parent=1 // pred_region
      %25 = vsyncadd [#allocation8], 0
      %s27 = sshll.u32 %s0, 4
      %s28 = int_to_ptr.vmem [resolvable:$true] %s27
      %30 = dma.vmem_to_smem %s28, 16, [#allocation5], [#allocation8]
    $region5: #{tpu_custom_call.1} parent=1 // pred_fallthru
      _
    // Predicated region
    $region6: #{tpu_custom_call.1} parent=1 // pred_check
      _
    $region7: #{tpu_custom_call.1} parent=1 // pred_check_branch
      %32 = sbr.rel (0) target = $region9
    $region8: #{tpu_custom_call.1} parent=1 // pred_region
      %34 = vsyncadd [#allocation10], 0
      %s36 = sshll.u32 %s1, 4
      %s37 = int_to_ptr.vmem [resolvable:$true] %s36
      %39 = dma.vmem_to_smem %s37, 16, [#allocation9], [#allocation10]
    $region9: #{tpu_custom_call.1} parent=1 // pred_fallthru
      _
    // Predicated region
    $region10: #{tpu_custom_call.1} parent=1 // pred_check
      _
    $region11: #{tpu_custom_call.1} parent=1 // pred_check_branch
      %41 = sbr.rel (0) target = $region13
    $region12: #{tpu_custom_call.1} parent=1 // pred_region
      _
    $region13: #{tpu_custom_call.1} parent=1 // pred_fallthru
      _
    // Predicated region
    $region14: #{tpu_custom_call.1} parent=1 // pred_check
      _
    $region15: #{tpu_custom_call.1} parent=1 // pred_check_branch
      %43 = sbr.rel (0) target = $region17
    $region16: #{tpu_custom_call.1} parent=1 // pred_region
      %45 = vsyncadd [#allocation6], 0
      %s46 = sshll.u32 %s3, 4
      %s47 = int_to_ptr.hbm [resolvable:$true] %s46
      %s48 = sshll.u32 [#allocation11], 4
      %s49 = int_to_ptr.vmem [resolvable:$true] %s48
      %54 = dma.hbm_to_vmem [thread:$0]  %s47, 256, %s49, [#allocation6], 128, 128, 8
    $region17: #{tpu_custom_call.1} parent=1 // pred_fallthru
      _
    // Predicated region
    $region18: #{tpu_custom_call.1} parent=1 // pred_check
      _
    $region19: #{tpu_custom_call.1} parent=1 // pred_check_branch
      %56 = sbr.rel (0) target = $region21
    $region20: #{tpu_custom_call.1} parent=1 // pred_region
      %58 = vsyncadd [#allocation13], 0
      %s59 = sshll.u32 %s4, 4
      %s60 = int_to_ptr.hbm [resolvable:$true] %s59
      %s61 = sshll.u32 [#allocation12], 4
      %s62 = int_to_ptr.vmem [resolvable:$true] %s61
      %67 = dma.hbm_to_vmem [thread:$0]  %s60, 1024, %s62, [#allocation13], 256, 256, 16
    $region21: #{tpu_custom_call.1} parent=1 // pred_fallthru
      _
    // Predicated region
    $region22: #{tpu_custom_call.1} parent=1 // pred_check
      _
    $region23: #{tpu_custom_call.1} parent=1 // pred_check_branch
      %69 = sbr.rel (0) target = $region25
    $region24: #{tpu_custom_call.1} parent=1 // pred_region
      %71 = vsyncadd [#allocation13], 0
      %s73 = sshll.u32 %s5, 4
      %s74 = int_to_ptr.hbm [resolvable:$true] %s73
      %s75 = sshll.u32 [#allocation14], 4
      %s76 = int_to_ptr.vmem [resolvable:$true] %s75
      %78 = dma.hbm_to_vmem [thread:$0]  %s74, 256, %s76, [#allocation13]
    $region25: #{tpu_custom_call.1} parent=1 // pred_fallthru
      _
    // Predicated region
    $region26: #{tpu_custom_call.1} parent=1 // pred_check
      _
    $region27: #{tpu_custom_call.1} parent=1 // pred_check_branch
      %80 = sbr.rel (0) target = $region29
    $region28: #{tpu_custom_call.1} parent=1 // pred_region
      %82 = vsyncadd [#allocation16], 0
      %s83 = sshll.u32 %s6, 4
      %s84 = int_to_ptr.hbm [resolvable:$true] %s83
      %s85 = sshll.u32 [#allocation15], 4
      %s86 = int_to_ptr.vmem [resolvable:$true] %s85
      %91 = dma.hbm_to_vmem [thread:$0]  %s84, 2048, %s86, [#allocation16], 64, 64, 4
    $region29: #{tpu_custom_call.1} parent=1 // pred_fallthru
      _
    // Predicated region
    $region30: #{tpu_custom_call.1} parent=1 // pred_check
      _
    $region31: #{tpu_custom_call.1} parent=1 // pred_check_branch
      %93 = sbr.rel (0) target = $region33
    $region32: #{tpu_custom_call.1} parent=1 // pred_region
      _
    $region33: #{tpu_custom_call.1} parent=1 // pred_fallthru
      _
    // Predicated region
    $region34: #{tpu_custom_call.1} parent=1 // pred_check
      _
    $region35: #{tpu_custom_call.1} parent=1 // pred_check_branch
      %95 = sbr.rel (0) target = $region37
    $region36: #{tpu_custom_call.1} parent=1 // pred_region
      %97 = vsyncadd [#allocation16], 0
      %s98 = sshll.u32 %s8, 4
      %s99 = int_to_ptr.hbm [resolvable:$true] %s98
      %s100 = sshll.u32 [#allocation17], 4
      %s101 = int_to_ptr.vmem [resolvable:$true] %s100
      %106 = dma.hbm_to_vmem [thread:$0]  %s99, 1024, %s101, [#allocation16], 64, 64, 4
    $region37: #{tpu_custom_call.1} parent=1 // pred_fallthru
      _
    // Predicated region
    $region38: #{tpu_custom_call.1} parent=1 // pred_check
      _
    $region39: #{tpu_custom_call.1} parent=1 // pred_check_branch
      %108 = sbr.rel (0) target = $region41
    $region40: #{tpu_custom_call.1} parent=1 // pred_region
      _
    $region41: #{tpu_custom_call.1} parent=1 // pred_fallthru
      _
    // Predicated region
    $region42: #{tpu_custom_call.1} parent=1 // pred_check
      _
    $region43: #{tpu_custom_call.1} parent=1 // pred_check_branch
      %110 = sbr.rel (0) target = $region45
    $region44: #{tpu_custom_call.1} parent=1 // pred_region
      %112 = dma.done [#allocation8], 16
    $region45: #{tpu_custom_call.1} parent=1 // pred_fallthru
      _
    // Predicated region
    $region46: #{tpu_custom_call.1} parent=1 // pred_check
      _
    $region47: #{tpu_custom_call.1} parent=1 // pred_check_branch
      %114 = sbr.rel (0) target = $region49
    $region48: #{tpu_custom_call.1} parent=1 // pred_region
      %116 = dma.done [#allocation10], 16
    $region49: #{tpu_custom_call.1} parent=1 // pred_fallthru
      _
    // Predicated region
    $region50: #{tpu_custom_call.1} parent=1 // pred_check
      _
    $region51: #{tpu_custom_call.1} parent=1 // pred_check_branch
      %118 = sbr.rel (0) target = $region53
    $region52: #{tpu_custom_call.1} parent=1 // pred_region
      %120 = dma.done [#allocation6], 256
    $region53: #{tpu_custom_call.1} parent=1 // pred_fallthru
      _
    // Predicated region
    $region54: #{tpu_custom_call.1} parent=1 // pred_check
      _
    $region55: #{tpu_custom_call.1} parent=1 // pred_check_branch
      %122 = sbr.rel (0) target = $region57
    $region56: #{tpu_custom_call.1} parent=1 // pred_region
      %124 = dma.done [#allocation13], 1024
    $region57: #{tpu_custom_call.1} parent=1 // pred_fallthru
      _
    // Predicated region
    $region58: #{tpu_custom_call.1} parent=1 // pred_check
      _
    $region59: #{tpu_custom_call.1} parent=1 // pred_check_branch
      %126 = sbr.rel (0) target = $region61
    $region60: #{tpu_custom_call.1} parent=1 // pred_region
      %128 = dma.done [#allocation13], 256
    $region61: #{tpu_custom_call.1} parent=1 // pred_fallthru
      _
    // Predicated region
    $region62: #{tpu_custom_call.1} parent=1 // pred_check
      _
    $region63: #{tpu_custom_call.1} parent=1 // pred_check_branch
      %130 = sbr.rel (0) target = $region65
    $region64: #{tpu_custom_call.1} parent=1 // pred_region
      %132 = dma.done [#allocation16], 2048
    $region65: #{tpu_custom_call.1} parent=1 // pred_fallthru
      _
    // Predicated region
    $region66: #{tpu_custom_call.1} parent=1 // pred_check
      _
    $region67: #{tpu_custom_call.1} parent=1 // pred_check_branch
      %134 = sbr.rel (0) target = $region69
    $region68: #{tpu_custom_call.1} parent=1 // pred_region
      %136 = dma.done [#allocation16], 1024
    $region69: #{tpu_custom_call.1} parent=1 // pred_fallthru
      _
    %137 = sfence
    %s138 = sld [smem:[#allocation5]]
    %s139 = sld [smem:[#allocation9]]
    %s140 = scalar_lea.vmem [#allocation11], %s138
    %v141 = vld [vmem:[%s140] sm:$0x1]
    %142 = vst [vmem:[#allocation2] sm:$0x1] %v141
    %s143 = sshra.s32 %s139, 3
    %s144 = sand.u32 %s139, 7
    %s145 = sshra.s32 %s139, 3
    %s146 = sand.u32 %s139, 7
    %s147 = smul.u32 %s143, 2
    %s148 = smul.u32 %s147, 8
    %s149 = sadd.s32 %s148, %s146
    %s150 = scalar_lea.vmem [#allocation12], %s149
    %v151 = vld [vmem:[%s150] ss:$8 sm:$0x3]
    %v152 = vlaneseq
    %vm153 = vcmp.ge.s32.totalorder %v152, 0
    %vm154 = vcmp.lt.s32.totalorder %v152, 256
    %vm155 = vmand %vm153, %vm154
    %156 = vst.msk [vmem:[#allocation3] ss:$8 sm:$0x3] %vm155, %v151
    %157 = vst.msk [vmem:[#allocation3] ss:$8 sm:$0x0] %vm155, %v151
    %s158 = sld [smem:[#allocation5 + $0x1]]
    %s159 = sld [smem:[#allocation9 + $0x1]]
    %s160 = scalar_lea.vmem [#allocation11], %s158
    %v161 = vld [vmem:[%s160] sm:$0x1]
    %162 = vst [vmem:[#allocation2 + $0x1] sm:$0x1] %v161
    %s163 = sshra.s32 %s159, 3
    %s164 = sand.u32 %s159, 7
    %s165 = sshra.s32 %s159, 3
    %s166 = sand.u32 %s159, 7
    %s167 = smul.u32 %s163, 2
    %s168 = smul.u32 %s167, 8
    %s169 = sadd.s32 %s168, %s166
    %s170 = scalar_lea.vmem [#allocation12], %s169
    %v171 = vld [vmem:[%s170] ss:$8 sm:$0x3]
    %s172 = scalar_lea.vmem [#allocation3], 1
    %173 = vst.msk [vmem:[%s172] ss:$8 sm:$0x3] %vm155, %v171
    %174 = vst.msk [vmem:[%s172] ss:$8 sm:$0x0] %vm155, %v171
    %s175 = sld [smem:[#allocation5 + $0x2]]
    %s176 = sld [smem:[#allocation9 + $0x2]]
    %s177 = scalar_lea.vmem [#allocation11], %s175
    %v178 = vld [vmem:[%s177] sm:$0x1]
    %179 = vst [vmem:[#allocation2 + $0x2] sm:$0x1] %v178
    %s180 = sshra.s32 %s176, 3
    %s181 = sand.u32 %s176, 7
    %s182 = sshra.s32 %s176, 3
    %s183 = sand.u32 %s176, 7
    %s184 = smul.u32 %s180, 2
    %s185 = smul.u32 %s184, 8
    %s186 = sadd.s32 %s185, %s183
    %s187 = scalar_lea.vmem [#allocation12], %s186
    %v188 = vld [vmem:[%s187] ss:$8 sm:$0x3]
    %s189 = scalar_lea.vmem [#allocation3], 2
    %190 = vst.msk [vmem:[%s189] ss:$8 sm:$0x3] %vm155, %v188
    %191 = vst.msk [vmem:[%s189] ss:$8 sm:$0x0] %vm155, %v188
    %s192 = sld [smem:[#allocation5 + $0x3]]
    %s193 = sld [smem:[#allocation9 + $0x3]]
    %s194 = scalar_lea.vmem [#allocation11], %s192
    %v195 = vld [vmem:[%s194] sm:$0x1]
    %196 = vst [vmem:[#allocation2 + $0x3] sm:$0x1] %v195
    %s197 = sshra.s32 %s193, 3
    %s198 = sand.u32 %s193, 7
    %s199 = sshra.s32 %s193, 3
    %s200 = sand.u32 %s193, 7
    %s201 = smul.u32 %s197, 2
    %s202 = smul.u32 %s201, 8
    %s203 = sadd.s32 %s202, %s200
    %s204 = scalar_lea.vmem [#allocation12], %s203
    %v205 = vld [vmem:[%s204] ss:$8 sm:$0x3]
    %s206 = scalar_lea.vmem [#allocation3], 3
    %207 = vst.msk [vmem:[%s206] ss:$8 sm:$0x3] %vm155, %v205
    %208 = vst.msk [vmem:[%s206] ss:$8 sm:$0x0] %vm155, %v205
    %s209 = sld [smem:[#allocation5 + $0x4]]
    %s210 = sld [smem:[#allocation9 + $0x4]]
    %s211 = scalar_lea.vmem [#allocation11], %s209
    %v212 = vld [vmem:[%s211] sm:$0x1]
    %213 = vst [vmem:[#allocation2 + $0x4] sm:$0x1] %v212
    %s214 = sshra.s32 %s210, 3
    %s215 = sand.u32 %s210, 7
    %s216 = sshra.s32 %s210, 3
    %s217 = sand.u32 %s210, 7
    %s218 = smul.u32 %s214, 2
    %s219 = smul.u32 %s218, 8
    %s220 = sadd.s32 %s219, %s217
    %s221 = scalar_lea.vmem [#allocation12], %s220
    %v222 = vld [vmem:[%s221] ss:$8 sm:$0x3]
    %s223 = scalar_lea.vmem [#allocation3], 4
    %224 = vst.msk [vmem:[%s223] ss:$8 sm:$0x3] %vm155, %v222
    %225 = vst.msk [vmem:[%s223] ss:$8 sm:$0x0] %vm155, %v222
    %s226 = sld [smem:[#allocation5 + $0x5]]
    %s227 = sld [smem:[#allocation9 + $0x5]]
    %s228 = scalar_lea.vmem [#allocation11], %s226
    %v229 = vld [vmem:[%s228] sm:$0x1]
    %230 = vst [vmem:[#allocation2 + $0x5] sm:$0x1] %v229
    %s231 = sshra.s32 %s227, 3
    %s232 = sand.u32 %s227, 7
    %s233 = sshra.s32 %s227, 3
    %s234 = sand.u32 %s227, 7
    %s235 = smul.u32 %s231, 2
    %s236 = smul.u32 %s235, 8
    %s237 = sadd.s32 %s236, %s234
    %s238 = scalar_lea.vmem [#allocation12], %s237
    %v239 = vld [vmem:[%s238] ss:$8 sm:$0x3]
    %s240 = scalar_lea.vmem [#allocation3], 5
    %241 = vst.msk [vmem:[%s240] ss:$8 sm:$0x3] %vm155, %v239
    %242 = vst.msk [vmem:[%s240] ss:$8 sm:$0x0] %vm155, %v239
    %s243 = sld [smem:[#allocation5 + $0x6]]
    %s244 = sld [smem:[#allocation9 + $0x6]]
    %s245 = scalar_lea.vmem [#allocation11], %s243
    %v246 = vld [vmem:[%s245] sm:$0x1]
    %247 = vst [vmem:[#allocation2 + $0x6] sm:$0x1] %v246
    %s248 = sshra.s32 %s244, 3
    %s249 = sand.u32 %s244, 7
    %s250 = sshra.s32 %s244, 3
    %s251 = sand.u32 %s244, 7
    %s252 = smul.u32 %s248, 2
    %s253 = smul.u32 %s252, 8
    %s254 = sadd.s32 %s253, %s251
    %s255 = scalar_lea.vmem [#allocation12], %s254
    %v256 = vld [vmem:[%s255] ss:$8 sm:$0x3]
    %s257 = scalar_lea.vmem [#allocation3], 6
    %258 = vst.msk [vmem:[%s257] ss:$8 sm:$0x3] %vm155, %v256
    %259 = vst.msk [vmem:[%s257] ss:$8 sm:$0x0] %vm155, %v256
    %s260 = sld [smem:[#allocation5 + $0x7]]
    %s261 = sld [smem:[#allocation9 + $0x7]]
    %s262 = scalar_lea.vmem [#allocation11], %s260
    %v263 = vld [vmem:[%s262] sm:$0x1]
    %264 = vst [vmem:[#allocation2 + $0x7] sm:$0x1] %v263
    %s265 = sshra.s32 %s261, 3
    %s266 = sand.u32 %s261, 7
    %s267 = sshra.s32 %s261, 3
    %s268 = sand.u32 %s261, 7
    %s269 = smul.u32 %s265, 2
    %s270 = smul.u32 %s269, 8
    %s271 = sadd.s32 %s270, %s268
    %s272 = scalar_lea.vmem [#allocation12], %s271
    %v273 = vld [vmem:[%s272] ss:$8 sm:$0x3]
    %s274 = scalar_lea.vmem [#allocation3], 7
    %275 = vst.msk [vmem:[%s274] ss:$8 sm:$0x3] %vm155, %v273
    %276 = vst.msk [vmem:[%s274] ss:$8 sm:$0x0] %vm155, %v273
    %v277 = vld [vmem:[#allocation3] sm:$0xff]
    %v278 = vld [vmem:[#allocation3 + $0x8] sm:$0xff]
    %v279 = vld [vmem:[#allocation14] sm:$0xff]
    %v280 = vld [vmem:[#allocation14 + $0x8] sm:$0xff]
    %s281 = sld [smem:[#allocation4]]
    %v282 = vstv %s281
    %v283 = vmul.f32 %v279, %v282
    %v284 = vmul.f32 %v280, %v282
    %v285 = vadd.f32 %v277, %v283
    %v286 = vadd.f32 %v278, %v284
    %v287 = vpack.c.bf16 %v285, %v285
    %v288 = vpack.c.bf16 %v286, %v286
    %v289 = vld [vmem:[#allocation15] sm:$0xf]
    %v290 = vld [vmem:[#allocation15 + $0x4] sm:$0xf]
    %v291 = vld [vmem:[#allocation15 + $0x8] sm:$0xf]
    %v292 = vld [vmem:[#allocation15 + $0xc] sm:$0xf]
    %v293 = vld [vmem:[#allocation15 + $0x10] sm:$0xf]
    %v294 = vld [vmem:[#allocation15 + $0x14] sm:$0xf]
    %v295 = vld [vmem:[#allocation15 + $0x18] sm:$0xf]
    %v296 = vld [vmem:[#allocation15 + $0x1c] sm:$0xf]
    %v297 = vld [vmem:[#allocation15 + $0x20] sm:$0xf]
    %v298 = vld [vmem:[#allocation15 + $0x24] sm:$0xf]
    %v299 = vld [vmem:[#allocation15 + $0x28] sm:$0xf]
    %v300 = vld [vmem:[#allocation15 + $0x2c] sm:$0xf]
    %v301 = vld [vmem:[#allocation15 + $0x30] sm:$0xf]
    %v302 = vld [vmem:[#allocation15 + $0x34] sm:$0xf]
    %v303 = vld [vmem:[#allocation15 + $0x38] sm:$0xf]
    %v304 = vld [vmem:[#allocation15 + $0x3c] sm:$0xf]
    %v305 = vld [vmem:[#allocation15 + $0x40] sm:$0xf]
    %v306 = vld [vmem:[#allocation15 + $0x44] sm:$0xf]
    %v307 = vld [vmem:[#allocation15 + $0x48] sm:$0xf]
    %v308 = vld [vmem:[#allocation15 + $0x4c] sm:$0xf]
    %v309 = vld [vmem:[#allocation15 + $0x50] sm:$0xf]
    %v310 = vld [vmem:[#allocation15 + $0x54] sm:$0xf]
    %v311 = vld [vmem:[#allocation15 + $0x58] sm:$0xf]
    %v312 = vld [vmem:[#allocation15 + $0x5c] sm:$0xf]
    %v313 = vld [vmem:[#allocation15 + $0x60] sm:$0xf]
    %v314 = vld [vmem:[#allocation15 + $0x64] sm:$0xf]
    %v315 = vld [vmem:[#allocation15 + $0x68] sm:$0xf]
    %v316 = vld [vmem:[#allocation15 + $0x6c] sm:$0xf]
    %v317 = vld [vmem:[#allocation15 + $0x70] sm:$0xf]
    %v318 = vld [vmem:[#allocation15 + $0x74] sm:$0xf]
    %v319 = vld [vmem:[#allocation15 + $0x78] sm:$0xf]
    %v320 = vld [vmem:[#allocation15 + $0x7c] sm:$0xf]
    %v321 = vld [vmem:[%s7] sm:$0x1]
    %v323 = vperm.slane %v321, 0
    %v357 = vunpack.c.l.b16 %v289
    %v358 = vunpack.c.l.b16 %v290
    %v359 = vunpack.c.l.b16 %v291
    %v360 = vunpack.c.l.b16 %v292
    %v361 = vunpack.c.l.b16 %v293
    %v362 = vunpack.c.l.b16 %v294
    %v363 = vunpack.c.l.b16 %v295
    %v364 = vunpack.c.l.b16 %v296
    %v365 = vunpack.c.l.b16 %v297
    %v366 = vunpack.c.l.b16 %v298
    %v367 = vunpack.c.l.b16 %v299
    %v368 = vunpack.c.l.b16 %v300
    %v369 = vunpack.c.l.b16 %v301
    %v370 = vunpack.c.l.b16 %v302
    %v371 = vunpack.c.l.b16 %v303
    %v372 = vunpack.c.l.b16 %v304
    %v373 = vunpack.c.l.b16 %v305
    %v374 = vunpack.c.l.b16 %v306
    %v375 = vunpack.c.l.b16 %v307
    %v376 = vunpack.c.l.b16 %v308
    %v377 = vunpack.c.l.b16 %v309
    %v378 = vunpack.c.l.b16 %v310
    %v379 = vunpack.c.l.b16 %v311
    %v380 = vunpack.c.l.b16 %v312
    %v381 = vunpack.c.l.b16 %v313
    %v382 = vunpack.c.l.b16 %v314
    %v383 = vunpack.c.l.b16 %v315
    %v384 = vunpack.c.l.b16 %v316
    %v385 = vunpack.c.l.b16 %v317
    %v386 = vunpack.c.l.b16 %v318
    %v387 = vunpack.c.l.b16 %v319
    %v388 = vunpack.c.l.b16 %v320
    %v389 = vpack.c.b16 %v358, %v357
    %v390 = vpack.c.b16 %v360, %v359
    %v391 = vpack.c.b16 %v362, %v361
    %v392 = vpack.c.b16 %v364, %v363
    %v393 = vpack.c.b16 %v366, %v365
    %v394 = vpack.c.b16 %v368, %v367
    %v395 = vpack.c.b16 %v370, %v369
    %v396 = vpack.c.b16 %v372, %v371
    %v397 = vpack.c.b16 %v374, %v373
    %v398 = vpack.c.b16 %v376, %v375
    %v399 = vpack.c.b16 %v378, %v377
    %v400 = vpack.c.b16 %v380, %v379
    %v401 = vpack.c.b16 %v382, %v381
    %v402 = vpack.c.b16 %v384, %v383
    %v403 = vpack.c.b16 %v386, %v385
    %v404 = vpack.c.b16 %v388, %v387
    %421 = vmatpush.bf16.msra.mxu0 %v396
    %422 = vmatpush.bf16.msra.mxu0 %v395
    %423 = vmatpush.bf16.msra.mxu0 %v394
    %424 = vmatpush.bf16.msra.mxu0 %v393
    %425 = vmatpush.bf16.msra.mxu0 %v392
    %426 = vmatpush.bf16.msra.mxu0 %v391
    %427 = vmatpush.bf16.msra.mxu0 %v390
    %428 = vmatpush.bf16.msra.mxu0 %v389
    %429 = vmatmul.bf16.gmra.mxu0 %v287
    %v430 = vpop.f32.mrf.mxu0
    %v431 = vadd.f32 %v323, %v430
    %v432 = vpop.f32.mrf.mxu0
    %433 = vdwg.mxu0
    %434 = vmatpush.bf16.msra.mxu0 %v404
    %435 = vmatpush.bf16.msra.mxu0 %v403
    %436 = vmatpush.bf16.msra.mxu0 %v402
    %437 = vmatpush.bf16.msra.mxu0 %v401
    %438 = vmatpush.bf16.msra.mxu0 %v400
    %439 = vmatpush.bf16.msra.mxu0 %v399
    %440 = vmatpush.bf16.msra.mxu0 %v398
    %441 = vmatpush.bf16.msra.mxu0 %v397
    %442 = vmatmul.bf16.gmra.mxu0 %v288
    %v443 = vpop.f32.mrf.mxu0
    %v444 = vadd.f32 %v431, %v443
    %v445 = vpop.f32.mrf.mxu0
    %446 = vdwg.mxu0
    %v447 = vld [vmem:[#allocation2] sm:$0xff]
    %v448 = vmul.f32 %v447, %v444
    %v449 = vpack.c.bf16 %v448, %v448
    %v450 = vld [vmem:[#allocation17] sm:$0xf]
    %v451 = vld [vmem:[#allocation17 + $0x4] sm:$0xf]
    %v452 = vld [vmem:[#allocation17 + $0x8] sm:$0xf]
    %v453 = vld [vmem:[#allocation17 + $0xc] sm:$0xf]
    %v454 = vld [vmem:[#allocation17 + $0x10] sm:$0xf]
    %v455 = vld [vmem:[#allocation17 + $0x14] sm:$0xf]
    %v456 = vld [vmem:[#allocation17 + $0x18] sm:$0xf]
    %v457 = vld [vmem:[#allocation17 + $0x1c] sm:$0xf]
    %v458 = vld [vmem:[#allocation17 + $0x20] sm:$0xf]
    %v459 = vld [vmem:[#allocation17 + $0x24] sm:$0xf]
    %v460 = vld [vmem:[#allocation17 + $0x28] sm:$0xf]
    %v461 = vld [vmem:[#allocation17 + $0x2c] sm:$0xf]
    %v462 = vld [vmem:[#allocation17 + $0x30] sm:$0xf]
    %v463 = vld [vmem:[#allocation17 + $0x34] sm:$0xf]
    %v464 = vld [vmem:[#allocation17 + $0x38] sm:$0xf]
    %v465 = vld [vmem:[#allocation17 + $0x3c] sm:$0xf]
    %v466 = vld [vmem:[%s9] sm:$0x1]
    %v468 = vperm.slane %v466, 0
    %v486 = vunpack.c.l.b16 %v450
    %v487 = vunpack.c.l.b16 %v451
    %v488 = vunpack.c.l.b16 %v452
    %v489 = vunpack.c.l.b16 %v453
    %v490 = vunpack.c.l.b16 %v454
    %v491 = vunpack.c.l.b16 %v455
    %v492 = vunpack.c.l.b16 %v456
    %v493 = vunpack.c.l.b16 %v457
    %v494 = vunpack.c.l.b16 %v458
    %v495 = vunpack.c.l.b16 %v459
    %v496 = vunpack.c.l.b16 %v460
    %v497 = vunpack.c.l.b16 %v461
    %v498 = vunpack.c.l.b16 %v462
    %v499 = vunpack.c.l.b16 %v463
    %v500 = vunpack.c.l.b16 %v464
    %v501 = vunpack.c.l.b16 %v465
    %v502 = vpack.c.b16 %v487, %v486
    %v503 = vpack.c.b16 %v489, %v488
    %v504 = vpack.c.b16 %v491, %v490
    %v505 = vpack.c.b16 %v493, %v492
    %v506 = vpack.c.b16 %v495, %v494
    %v507 = vpack.c.b16 %v497, %v496
    %v508 = vpack.c.b16 %v499, %v498
    %v509 = vpack.c.b16 %v501, %v500
    %518 = vmatpush.bf16.msra.mxu0 %v509
    %519 = vmatpush.bf16.msra.mxu0 %v508
    %520 = vmatpush.bf16.msra.mxu0 %v507
    %521 = vmatpush.bf16.msra.mxu0 %v506
    %522 = vmatpush.bf16.msra.mxu0 %v505
    %523 = vmatpush.bf16.msra.mxu0 %v504
    %524 = vmatpush.bf16.msra.mxu0 %v503
    %525 = vmatpush.bf16.msra.mxu0 %v502
    %526 = vmatmul.bf16.gmra.mxu0 %v449
    %v527 = vpop.f32.mrf.mxu0
    %v528 = vadd.f32 %v468, %v527
    %v529 = vpop.f32.mrf.mxu0
    %530 = vdwg.mxu0
    %531 = vst [vmem:[#allocation18] sm:$0xff] %v528
    // Predicated region
    $region70: #{tpu_custom_call.1} parent=1 // pred_check
      _
    $region71: #{tpu_custom_call.1} parent=1 // pred_check_branch
      %533 = sbr.rel (0) target = $region73
    $region72: #{tpu_custom_call.1} parent=1 // pred_region
      %535 = vsyncadd [#allocation7], 0
      %s537 = sshll.u32 [#allocation18], 4
      %s538 = int_to_ptr.vmem [resolvable:$true] %s537
      %s539 = sshll.u32 %s10, 4
      %s540 = int_to_ptr.hbm [resolvable:$true] %s539
      %542 = dma.vmem_to_hbm [thread:$0]  %s538, 128, %s540, [#allocation7]
    $region73: #{tpu_custom_call.1} parent=1 // pred_fallthru
      _
    // Predicated region
    $region74: #{tpu_custom_call.1} parent=1 // pred_check
      _
    $region75: #{tpu_custom_call.1} parent=1 // pred_check_branch
      %544 = sbr.rel (0) target = $region77
    $region76: #{tpu_custom_call.1} parent=1 // pred_region
      %546 = dma.done [#allocation7], 128
    $region77: #{tpu_custom_call.1} parent=1 // pred_fallthru
      _
    %547 = vsyncpa [#allocation6], 1
    %548 = vsyncpa [#allocation13], 1
    %549 = vsyncpa [#allocation16], 1
    %550 = vsyncpa [#allocation7], 1
    %551 = vsyncpa [#allocation8], 1
    %552 = vsyncpa [#allocation10], 1

</llo_original>
